<compile_context>
chip_gen: v6e
topology: v6e:2x2x1
jax: 0.10.0
libtpu: 0.0.40
codegen_flags: <defaults>
</compile_context>

<pallas_src>
import jax
import jax.numpy as jnp
from jax.experimental import pallas as pl
from jax.experimental.pallas import tpu as pltpu

H1 = 128
H2 = 256


def bpnn_kernel(x_ref, w1_ref, b1_ref, w2_ref, b2_ref, w3_ref, b3_ref, o_ref):
    # fc1 + ReLU  (bf16 x bf16 on the MXU, f32 accumulation, f32 elementwise)
    h1 = jnp.dot(x_ref[...], w1_ref[...], preferred_element_type=jnp.float32)
    h1 = jnp.maximum(h1 + b1_ref[...], 0.0)

    # fc2 + ReLU  (cast activations back to bf16 for the MXU, accumulate f32)
    h2 = jnp.dot(h1.astype(jnp.bfloat16), w2_ref[...],
                 preferred_element_type=jnp.float32)
    h2 = jnp.maximum(h2 + b2_ref[...], 0.0)

    # fc3 (K=256, N=1): VPU multiply + XLU lane-reduce instead of an N=1 MXU
    # matmul that would use a single MXU column and pay full push/pop latency.
    w3_row = w3_ref[...].astype(jnp.float32)                  # [1, H2]
    logits = jnp.sum(h2 * w3_row, axis=-1, keepdims=True) + b3_ref[...]

    o_ref[...] = jax.nn.sigmoid(logits)


def _pick_batch_tile(batch):
    # Big tiles amortize the ~0.35 us per-grid-step overhead; 1024 rows of the
    # 256-wide f32 intermediate is ~1 MiB, far under any VMEM limit.
    return batch if batch <= 1024 else 1024


def bpnn_forward(x, params):
    """x: [B, input_size] bfloat16 (or float32). Returns [B, 1] float32."""
    w1, b1, w2, b2, w3, b3 = (params["w1"], params["b1"], params["w2"],
                              params["b2"], params["w3"], params["b3"])
    B, F = x.shape
    TB = _pick_batch_tile(B)
    grid = (pl.cdiv(B, TB),)

    resident = lambda shape: pl.BlockSpec(shape, lambda i: (0, 0))

    in_specs = [
        pl.BlockSpec((TB, F), lambda i: (i, 0)),   # x: tiled over the batch grid
        resident((F, H1)),                         # w1
        resident((1, H1)),                         # b1
        resident((H1, H2)),                        # w2
        resident((1, H2)),                         # b2
        resident((1, H2)),                         # w3 (row layout for VPU reduce)
        resident((1, 1)),                          # b3
    ]
    out_spec = pl.BlockSpec((TB, 1), lambda i: (i, 0))
    # TODO(synk): output is 1 lane wide -> masked partial stores; padding N to
    # 128 would make stores lane-dense but changes the result shape.

    flops = 2 * B * (F * H1 + H1 * H2 + H2)
    bytes_accessed = (
        B * F * x.dtype.itemsize
        + w1.size * w1.dtype.itemsize + w2.size * w2.dtype.itemsize
        + w3.size * w3.dtype.itemsize
        + (b1.size + b2.size + b3.size) * 4
        + B * 4
    )
    cost = pl.CostEstimate(flops=flops, transcendentals=B,
                           bytes_accessed=bytes_accessed)

    return pl.pallas_call(
        bpnn_kernel,
        out_shape=jax.ShapeDtypeStruct((B, 1), jnp.float32),
        grid=grid,
        in_specs=in_specs,
        out_specs=out_spec,
        compiler_params=pltpu.CompilerParams(
            dimension_semantics=("parallel",),      # megacore-shard the batch
            vmem_limit_bytes=32 * 1024 * 1024,      # covers v5e's 16 MiB default
        ),
        cost_estimate=cost,
    )(x, w1, b1, w2, b2, w3, b3)


def init_params(key, input_size):
    """Init mimicking PyTorch nn.Linear default U(-1/sqrt(fan_in), +)."""
    def linear(key, fan_in, fan_out, transpose):
        kw, kb = jax.random.split(key)
        bound = 1.0 / jnp.sqrt(fan_in)
        if transpose:   # stored [in, out] for x @ W
            w = jax.random.uniform(kw, (fan_in, fan_out), jnp.float32, -bound, bound)
        else:           # torch layout [out, in] (used as a broadcast row)
            w = jax.random.uniform(kw, (fan_out, fan_in), jnp.float32, -bound, bound)
        b = jax.random.uniform(kb, (1, fan_out), jnp.float32, -bound, bound)
        return w.astype(jnp.bfloat16), b   # weights bf16, biases f32

    k1, k2, k3 = jax.random.split(key, 3)
    w1, b1 = linear(k1, input_size, H1, transpose=True)
    w2, b2 = linear(k2, H1, H2, transpose=True)
    w3, b3 = linear(k3, H2, 1, transpose=False)     # w3: [1, 256] row
    return {"w1": w1, "b1": b1, "w2": w2, "b2": b2, "w3": w3, "b3": b3}


def bpnn_reference(x, params):
    """Pure-JAX f32 reference (weights upcast to f32)."""
    w1 = params["w1"].astype(jnp.float32)
    w2 = params["w2"].astype(jnp.float32)
    w3 = params["w3"].astype(jnp.float32)
    h1 = jnp.maximum(x @ w1 + params["b1"], 0.0)
    h2 = jnp.maximum(h1 @ w2 + params["b2"], 0.0)
    return jax.nn.sigmoid(jnp.sum(h2 * w3, axis=-1, keepdims=True) + params["b3"])


if __name__ == "__main__":
    key = jax.random.PRNGKey(0)
    k_x, k_p = jax.random.split(key)

    batch = 8
    input_size = 32  # small synthetic feature dimension

    x_f32 = jax.random.normal(k_x, (batch, input_size), jnp.float32)
    x = x_f32.astype(jnp.bfloat16)          # bf16 input halves HBM traffic
    params = init_params(k_p, input_size)

    out = bpnn_forward(x, params)
    jax.block_until_ready(out)

    ref = bpnn_reference(x.astype(jnp.float32), params)
    assert out.shape == (batch, 1)
    assert jnp.allclose(out, ref, atol=3e-2, rtol=3e-2), \
        "Pallas output mismatch vs reference"

    print("KERNEL_OK")
</pallas_src>

<mosaic_0001>
module attributes {stable_mosaic.version = 11 : i64} {
  func.func @bpnn_kernel(%arg0: i32, %arg1: memref<8x32xbf16, #tpu.memory_space<vmem>>, %arg2: memref<32x128xbf16, #tpu.memory_space<vmem>>, %arg3: memref<1x128xf32, #tpu.memory_space<vmem>>, %arg4: memref<128x256xbf16, #tpu.memory_space<vmem>>, %arg5: memref<1x256xf32, #tpu.memory_space<vmem>>, %arg6: memref<1x256xbf16, #tpu.memory_space<vmem>>, %arg7: memref<1x1xf32, #tpu.memory_space<vmem>>, %arg8: memref<8x1xf32, #tpu.memory_space<vmem>>) attributes {dimension_semantics = [#tpu.dimension_semantics<parallel>], iteration_bounds = array<i64: 1>, scalar_prefetch = 0 : i64, scratch_operands = 0 : i64, tpu.core_type = #tpu.core_type<tc>, window_params = [{transform_indices = @transform_0, window_bounds = array<i64: 8, 32>}, {pipeline_mode = #tpu.pipeline_mode<synchronous>, transform_indices = @transform_1, window_bounds = array<i64: 32, 128>}, {pipeline_mode = #tpu.pipeline_mode<synchronous>, transform_indices = @transform_2, window_bounds = array<i64: 1, 128>}, {pipeline_mode = #tpu.pipeline_mode<synchronous>, transform_indices = @transform_3, window_bounds = array<i64: 128, 256>}, {pipeline_mode = #tpu.pipeline_mode<synchronous>, transform_indices = @transform_4, window_bounds = array<i64: 1, 256>}, {pipeline_mode = #tpu.pipeline_mode<synchronous>, transform_indices = @transform_5, window_bounds = array<i64: 1, 256>}, {pipeline_mode = #tpu.pipeline_mode<synchronous>, transform_indices = @transform_6, window_bounds = array<i64: 1, 1>}, {transform_indices = @transform_7, window_bounds = array<i64: 8, 1>}]} {
    %c0 = arith.constant 0 : index
    %c0_0 = arith.constant 0 : index
    %0 = vector.load %arg1[%c0, %c0_0] : memref<8x32xbf16, #tpu.memory_space<vmem>>, vector<8x32xbf16>
    %c0_1 = arith.constant 0 : index
    %c0_2 = arith.constant 0 : index
    %1 = vector.load %arg2[%c0_1, %c0_2] : memref<32x128xbf16, #tpu.memory_space<vmem>>, vector<32x128xbf16>
    %cst = arith.constant dense<0.000000e+00> : vector<8x128xf32>
    %2 = tpu.matmul %0, %1, %cst {dimension_numbers = #tpu.dot_dimension_numbers<[1], [0], [0], [1], [0, 0, 1, 1], [], []>} : vector<8x32xbf16>, vector<32x128xbf16>, vector<8x128xf32> -> vector<8x128xf32>
    %c0_3 = arith.constant 0 : index
    %c0_4 = arith.constant 0 : index
    %3 = vector.load %arg3[%c0_3, %c0_4] : memref<1x128xf32, #tpu.memory_space<vmem>>, vector<1x128xf32>
    %4 = vector.broadcast %3 : vector<1x128xf32> to vector<8x128xf32>
    %5 = arith.addf %2, %4 : vector<8x128xf32>
    %cst_5 = arith.constant 0.000000e+00 : f32
    %6 = vector.broadcast %cst_5 : f32 to vector<8x128xf32>
    %7 = arith.maximumf %5, %6 : vector<8x128xf32>
    %8 = arith.truncf %7 : vector<8x128xf32> to vector<8x128xbf16>
    %c0_6 = arith.constant 0 : index
    %c0_7 = arith.constant 0 : index
    %9 = vector.load %arg4[%c0_6, %c0_7] : memref<128x256xbf16, #tpu.memory_space<vmem>>, vector<128x256xbf16>
    %cst_8 = arith.constant dense<0.000000e+00> : vector<8x256xf32>
    %10 = tpu.matmul %8, %9, %cst_8 {dimension_numbers = #tpu.dot_dimension_numbers<[1], [0], [0], [1], [0, 0, 1, 1], [], []>} : vector<8x128xbf16>, vector<128x256xbf16>, vector<8x256xf32> -> vector<8x256xf32>
    %c0_9 = arith.constant 0 : index
    %c0_10 = arith.constant 0 : index
    %11 = vector.load %arg5[%c0_9, %c0_10] : memref<1x256xf32, #tpu.memory_space<vmem>>, vector<1x256xf32>
    %12 = vector.broadcast %11 : vector<1x256xf32> to vector<8x256xf32>
    %13 = arith.addf %10, %12 : vector<8x256xf32>
    %cst_11 = arith.constant 0.000000e+00 : f32
    %14 = vector.broadcast %cst_11 : f32 to vector<8x256xf32>
    %15 = arith.maximumf %13, %14 : vector<8x256xf32>
    %c0_12 = arith.constant 0 : index
    %c0_13 = arith.constant 0 : index
    %16 = vector.load %arg6[%c0_12, %c0_13] : memref<1x256xbf16, #tpu.memory_space<vmem>>, vector<1x256xbf16>
    %17 = arith.extf %16 : vector<1x256xbf16> to vector<1x256xf32>
    %18 = vector.broadcast %17 : vector<1x256xf32> to vector<8x256xf32>
    %19 = arith.mulf %15, %18 : vector<8x256xf32>
    %cst_14 = arith.constant dense<0.000000e+00> : vector<8xf32>
    %20 = vector.multi_reduction <add>, %19, %cst_14 [1] : vector<8x256xf32> to vector<8xf32>
    %21 = vector.shape_cast %20 : vector<8xf32> to vector<8x1xf32>
    %c0_15 = arith.constant 0 : index
    %c0_16 = arith.constant 0 : index
    %22 = vector.load %arg7[%c0_15, %c0_16] : memref<1x1xf32, #tpu.memory_space<vmem>>, vector<1x1xf32>
    %23 = vector.broadcast %22 : vector<1x1xf32> to vector<8x1xf32>
    %24 = arith.addf %21, %23 : vector<8x1xf32>
    %25 = arith.negf %24 : vector<8x1xf32>
    %26 = math.exp %25 : vector<8x1xf32>
    %cst_17 = arith.constant 1.000000e+00 : f32
    %27 = vector.broadcast %cst_17 : f32 to vector<8x1xf32>
    %28 = arith.addf %27, %26 : vector<8x1xf32>
    %29 = arith.divf %27, %28 : vector<8x1xf32>
    %c0_18 = arith.constant 0 : index
    %c0_19 = arith.constant 0 : index
    %30 = vector.load %arg8[%c0_18, %c0_19] : memref<8x1xf32, #tpu.memory_space<vmem>>, vector<8x1xf32>
    tpu.vector_store %arg8[%c0_18, %c0_19], %29 {strides = array<i32>} : memref<8x1xf32, #tpu.memory_space<vmem>>, vector<8x1xf32>,
    return
  }
  func.func @transform_0(%arg0: i32) -> (i32, i32) {
    %c0_i32 = arith.constant 0 : i32
    %c0_i32_0 = arith.constant 0 : i32
    return %arg0, %c0_i32 : i32, i32
  }
  func.func @transform_1(%arg0: i32) -> (i32, i32) {
    %c0_i32 = arith.constant 0 : i32
    %c0_i32_0 = arith.constant 0 : i32
    %c0_i32_1 = arith.constant 0 : i32
    return %c0_i32, %c0_i32_0 : i32, i32
  }
  func.func @transform_2(%arg0: i32) -> (i32, i32) {
    %c0_i32 = arith.constant 0 : i32
    %c0_i32_0 = arith.constant 0 : i32
    %c0_i32_1 = arith.constant 0 : i32
    return %c0_i32, %c0_i32_0 : i32, i32
  }
  func.func @transform_3(%arg0: i32) -> (i32, i32) {
    %c0_i32 = arith.constant 0 : i32
    %c0_i32_0 = arith.constant 0 : i32
    %c0_i32_1 = arith.constant 0 : i32
    return %c0_i32, %c0_i32_0 : i32, i32
  }
  func.func @transform_4(%arg0: i32) -> (i32, i32) {
    %c0_i32 = arith.constant 0 : i32
    %c0_i32_0 = arith.constant 0 : i32
    %c0_i32_1 = arith.constant 0 : i32
    return %c0_i32, %c0_i32_0 : i32, i32
  }
  func.func @transform_5(%arg0: i32) -> (i32, i32) {
    %c0_i32 = arith.constant 0 : i32
    %c0_i32_0 = arith.constant 0 : i32
    %c0_i32_1 = arith.constant 0 : i32
    return %c0_i32, %c0_i32_0 : i32, i32
  }
  func.func @transform_6(%arg0: i32) -> (i32, i32) {
    %c0_i32 = arith.constant 0 : i32
    %c0_i32_0 = arith.constant 0 : i32
    %c0_i32_1 = arith.constant 0 : i32
    return %c0_i32, %c0_i32_0 : i32, i32
  }
  func.func @transform_7(%arg0: i32) -> (i32, i32) {
    %c0_i32 = arith.constant 0 : i32
    %c0_i32_0 = arith.constant 0 : i32
    return %arg0, %c0_i32 : i32, i32
  }
}

</mosaic_0001>

<llo_original>
// kernel: tpu_custom_call.1
$region0: #{tpu_custom_call.1}
  #allocation0 [shape = 'u32[]', space=smem, size = 0x4, offset = 0x4, fixed_abs, tag = 'smem constant byte address 0x4 - core index']
  #allocation1 [shape = 'u32[144,128]{1,0:T(1,128)}', space=vmem, size = 0x12000, scoped, tag = 'internal scratch']
  #allocation2 [shape = 'f32[1,1]{1,0:T(1,128)S(1)}', space=vmem, size = 0x200, scoped, tag = 'scoped memory for tpu_custom_call.1']
  %s0 = inlined_call_operand.hbm [shape: bf16[8,32], index: 0, kind: input, shape index: {}]
  %s1 = inlined_call_operand.hbm [shape: bf16[32,128], index: 1, kind: input, shape index: {}]
  %s2 = inlined_call_operand.vmem [shape: f32[1,128], index: 2, kind: input, shape index: {}]
  %s3 = inlined_call_operand.hbm [shape: bf16[128,256], index: 3, kind: input, shape index: {}]
  %s4 = inlined_call_operand.vmem [shape: f32[1,256], index: 4, kind: input, shape index: {}]
  %s5 = inlined_call_operand.vmem [shape: bf16[1,256], index: 5, kind: input, shape index: {}]
  %s6 = inlined_call_operand.<no memory space> [shape: f32[1,1], index: 6, kind: input, shape index: {}]
  %s7 = inlined_call_operand.vmem [shape: f32[8,1], index: 7, kind: output, shape index: {}]
  %s8 = sld [smem:[#allocation0]]
  $region50: #{tpu_custom_call.1} parent=0
    _
  %s10 = ssub.s32 1, %s8
  %s11 = scalar_select 0, %s10, %s8
  %v12 = vstv %s6
  %13 = vst [vmem:[#allocation2] sm:$0x1] %v12
  $region1: #{tpu_custom_call.1} parent=0
    #allocation3 [shape = 'u8[2048]{0}', space=vmem, size = 0x800, scoped, tag = 'input window, operand 0, single buffered']
    #allocation4 [shape = 's32[1]{0}', space=sflag, size = 0x4, scoped, tag = 'scoped memory for tpu_custom_call.1']
    #allocation5 [shape = 'u8[8192]{0}', space=vmem, size = 0x2000, scoped, tag = 'input window, operand 1, single buffered']
    #allocation6 [shape = 's32[1]{0}', space=sflag, size = 0x4, scoped, tag = 'scoped memory for tpu_custom_call.1']
    #allocation7 [shape = 'u8[65536]{0}', space=vmem, size = 0x10000, scoped, tag = 'input window, operand 3, single buffered']
    %14 = vsyncpa [#allocation4], 0
    %15 = vsyncpa [#allocation6], 0
    // Predicated region
    $region2: #{tpu_custom_call.1} parent=1 // pred_check
      _
    $region3: #{tpu_custom_call.1} parent=1 // pred_check_branch
      %17 = sbr.rel (0) target = $region5
    $region4: #{tpu_custom_call.1} parent=1 // pred_region
      %s19 = ssub.s32 64, 64
      %20 = vsyncadd [#allocation4], %s19
      %s22 = sshll.u32 [#allocation3], 4
      %s23 = int_to_ptr.vmem [resolvable:$true] %s22
      %25 = dma.hbm_to_vmem [thread:$0]  %s0, 64, %s23, [#allocation4]
    $region5: #{tpu_custom_call.1} parent=1 // pred_fallthru
      _
    // Predicated region
    $region6: #{tpu_custom_call.1} parent=1 // pred_check
      _
    $region7: #{tpu_custom_call.1} parent=1 // pred_check_branch
      %27 = sbr.rel (0) target = $region9
    $region8: #{tpu_custom_call.1} parent=1 // pred_region
      %s29 = ssub.s32 256, 256
      %30 = vsyncadd [#allocation6], %s29
      %s31 = sshll.u32 [#allocation5], 4
      %s32 = int_to_ptr.vmem [resolvable:$true] %s31
      %37 = dma.hbm_to_vmem [thread:$0]  %s1, 256, %s32, [#allocation6], 64, 64, 4
    $region9: #{tpu_custom_call.1} parent=1 // pred_fallthru
      _
    // Predicated region
    $region10: #{tpu_custom_call.1} parent=1 // pred_check
      _
    $region11: #{tpu_custom_call.1} parent=1 // pred_check_branch
      %39 = sbr.rel (0) target = $region13
    $region12: #{tpu_custom_call.1} parent=1 // pred_region
      _
    $region13: #{tpu_custom_call.1} parent=1 // pred_fallthru
      _
    // Predicated region
    $region14: #{tpu_custom_call.1} parent=1 // pred_check
      _
    $region15: #{tpu_custom_call.1} parent=1 // pred_check_branch
      %41 = sbr.rel (0) target = $region17
    $region16: #{tpu_custom_call.1} parent=1 // pred_region
      %s43 = ssub.s32 2048, 2048
      %44 = vsyncadd [#allocation6], %s43
      %s45 = sshll.u32 [#allocation7], 4
      %s46 = int_to_ptr.vmem [resolvable:$true] %s45
      %51 = dma.hbm_to_vmem [thread:$0]  %s3, 2048, %s46, [#allocation6], 128, 128, 8
    $region17: #{tpu_custom_call.1} parent=1 // pred_fallthru
      _
    // Predicated region
    $region18: #{tpu_custom_call.1} parent=1 // pred_check
      _
    $region19: #{tpu_custom_call.1} parent=1 // pred_check_branch
      %53 = sbr.rel (0) target = $region21
    $region20: #{tpu_custom_call.1} parent=1 // pred_region
      _
    $region21: #{tpu_custom_call.1} parent=1 // pred_fallthru
      _
    // Predicated region
    $region22: #{tpu_custom_call.1} parent=1 // pred_check
      _
    $region23: #{tpu_custom_call.1} parent=1 // pred_check_branch
      %55 = sbr.rel (0) target = $region25
    $region24: #{tpu_custom_call.1} parent=1 // pred_region
      _
    $region25: #{tpu_custom_call.1} parent=1 // pred_fallthru
      _
    // Predicated region
    $region26: #{tpu_custom_call.1} parent=1 // pred_check
      _
    $region27: #{tpu_custom_call.1} parent=1 // pred_check_branch
      %57 = sbr.rel (0) target = $region29
    $region28: #{tpu_custom_call.1} parent=1 // pred_region
      _
    $region29: #{tpu_custom_call.1} parent=1 // pred_fallthru
      _
    // Predicated region
    $region30: #{tpu_custom_call.1} parent=1 // pred_check
      _
    $region31: #{tpu_custom_call.1} parent=1 // pred_check_branch
      %59 = sbr.rel (0) target = $region33
    $region32: #{tpu_custom_call.1} parent=1 // pred_region
      %60 = dma.done [#allocation4], 64
    $region33: #{tpu_custom_call.1} parent=1 // pred_fallthru
      _
    // Predicated region
    $region34: #{tpu_custom_call.1} parent=1 // pred_check
      _
    $region35: #{tpu_custom_call.1} parent=1 // pred_check_branch
      %62 = sbr.rel (0) target = $region37
    $region36: #{tpu_custom_call.1} parent=1 // pred_region
      %63 = dma.done [#allocation6], 256
    $region37: #{tpu_custom_call.1} parent=1 // pred_fallthru
      _
    // Predicated region
    $region38: #{tpu_custom_call.1} parent=1 // pred_check
      _
    $region39: #{tpu_custom_call.1} parent=1 // pred_check_branch
      %65 = sbr.rel (0) target = $region41
    $region40: #{tpu_custom_call.1} parent=1 // pred_region
      %66 = dma.done [#allocation6], 2048
    $region41: #{tpu_custom_call.1} parent=1 // pred_fallthru
      _
    %v68 = vld [vmem:[#allocation3] sm:$0xf]
    %v69 = vld [vmem:[#allocation5] sm:$0xf]
    %v70 = vld [vmem:[#allocation5 + $0x4] sm:$0xf]
    %v71 = vld [vmem:[#allocation5 + $0x8] sm:$0xf]
    %v72 = vld [vmem:[#allocation5 + $0xc] sm:$0xf]
    %v73 = vld [vmem:[%s2] sm:$0x1]
    %v75 = vlaneseq
    %v76 = vshrl.u32 %v75, 7
    %v77 = vsub.s32 0, %v76
    %v78 = vrot.slane %v73, %v77
    %v84 = vunpack.c.l.b16 %v69
    %v85 = vunpack.c.l.b16 %v70
    %v86 = vunpack.c.l.b16 %v71
    %v87 = vunpack.c.l.b16 %v72
    %v88 = vpack.c.b16 %v85, %v84
    %v89 = vpack.c.b16 %v87, %v86
    %vm92 = vcmask 261120
    %v94 = vsel %vm92, %v68, 0
    %96 = vmatprep.subr.bf16.mxu0 0
    %97 = vmatpush1.bf16.msra.mxu0 0
    %98 = vmatprep.subr.bf16.mxu0 0
    %99 = vmatpush1.bf16.msra.mxu0 0
    %100 = vmatprep.subr.bf16.mxu0 0
    %101 = vmatpush1.bf16.msra.mxu0 0
    %102 = vmatprep.subr.bf16.mxu0 0
    %103 = vmatpush1.bf16.msra.mxu0 0
    %104 = vmatprep.subr.bf16.mxu0 0
    %105 = vmatpush1.bf16.msra.mxu0 0
    %106 = vmatprep.subr.bf16.mxu0 0
    %107 = vmatpush1.bf16.msra.mxu0 0
    %108 = vmatprep.subr.bf16.mxu0 0
    %109 = vmatpush1.bf16.msra.mxu0 %v89
    %110 = vmatprep.subr.bf16.mxu0 0
    %111 = vmatpush1.bf16.msra.mxu0 %v88
    %112 = vmatprep.subr.bf16.mxu0 0
    %113 = vmatpush2.bf16.msra.mxu0 0
    %114 = vmatprep.subr.bf16.mxu0 0
    %115 = vmatpush2.bf16.msra.mxu0 0
    %116 = vmatprep.subr.bf16.mxu0 0
    %117 = vmatpush2.bf16.msra.mxu0 0
    %118 = vmatprep.subr.bf16.mxu0 0
    %119 = vmatpush2.bf16.msra.mxu0 0
    %120 = vmatprep.subr.bf16.mxu0 0
    %121 = vmatpush2.bf16.msra.mxu0 0
    %122 = vmatprep.subr.bf16.mxu0 0
    %123 = vmatpush2.bf16.msra.mxu0 0
    %124 = vmatprep.subr.bf16.mxu0 0
    %125 = vmatpush2.bf16.msra.mxu0 0
    %126 = vmatprep.subr.bf16.mxu0 0
    %127 = vmatpush2.bf16.msra.mxu0 0
    %128 = vmatprep.mubr.bf16.mxu0 0
    %129 = vmatmul.mubr.bf16.gmra.mxu0 %v94
    %v130 = vpop.f32.mrf.mxu0
    %v131 = vadd.f32 %v78, %v130
    %v132 = vpop.f32.mrf.mxu0
    %v133 = vpop.f32.mrf.mxu0
    %v134 = vpop.f32.mrf.mxu0
    %135 = vdwg.mxu0
    %v136 = vmax.f32 %v131, 0.0
    %v137 = vpack.c.bf16 %v136, %v136
    %v138 = vld [vmem:[#allocation7] sm:$0xff]
    %v139 = vld [vmem:[#allocation7 + $0x8] sm:$0xff]
    %v140 = vld [vmem:[#allocation7 + $0x10] sm:$0xff]
    %v141 = vld [vmem:[#allocation7 + $0x18] sm:$0xff]
    %v142 = vld [vmem:[#allocation7 + $0x20] sm:$0xff]
    %v143 = vld [vmem:[#allocation7 + $0x28] sm:$0xff]
    %v144 = vld [vmem:[#allocation7 + $0x30] sm:$0xff]
    %v145 = vld [vmem:[#allocation7 + $0x38] sm:$0xff]
    %v146 = vld [vmem:[#allocation7 + $0x40] sm:$0xff]
    %v147 = vld [vmem:[#allocation7 + $0x48] sm:$0xff]
    %v148 = vld [vmem:[#allocation7 + $0x50] sm:$0xff]
    %v149 = vld [vmem:[#allocation7 + $0x58] sm:$0xff]
    %v150 = vld [vmem:[#allocation7 + $0x60] sm:$0xff]
    %v151 = vld [vmem:[#allocation7 + $0x68] sm:$0xff]
    %v152 = vld [vmem:[#allocation7 + $0x70] sm:$0xff]
    %v153 = vld [vmem:[#allocation7 + $0x78] sm:$0xff]
    %v154 = vld [vmem:[%s4] sm:$0x3]
    %v156 = vlaneseq
    %v157 = vshrl.u32 %v156, 7
    %v158 = vsub.s32 0, %v157
    %v159 = vrot.slane %v154, %v158
    %v160 = vlaneseq
    %v161 = vshrl.u32 %v160, 7
    %v162 = vsub.s32 1, %v161
    %v163 = vrot.slane %v154, %v162
    %v182 = vunpack.c.l.b16 %v138
    %v183 = vunpack.c.h.b16 %v138
    %v184 = vunpack.c.l.b16 %v139
    %v185 = vunpack.c.h.b16 %v139
    %v186 = vunpack.c.l.b16 %v140
    %v187 = vunpack.c.h.b16 %v140
    %v188 = vunpack.c.l.b16 %v141
    %v189 = vunpack.c.h.b16 %v141
    %v190 = vunpack.c.l.b16 %v142
    %v191 = vunpack.c.h.b16 %v142
    %v192 = vunpack.c.l.b16 %v143
    %v193 = vunpack.c.h.b16 %v143
    %v194 = vunpack.c.l.b16 %v144
    %v195 = vunpack.c.h.b16 %v144
    %v196 = vunpack.c.l.b16 %v145
    %v197 = vunpack.c.h.b16 %v145
    %v198 = vunpack.c.l.b16 %v146
    %v199 = vunpack.c.h.b16 %v146
    %v200 = vunpack.c.l.b16 %v147
    %v201 = vunpack.c.h.b16 %v147
    %v202 = vunpack.c.l.b16 %v148
    %v203 = vunpack.c.h.b16 %v148
    %v204 = vunpack.c.l.b16 %v149
    %v205 = vunpack.c.h.b16 %v149
    %v206 = vunpack.c.l.b16 %v150
    %v207 = vunpack.c.h.b16 %v150
    %v208 = vunpack.c.l.b16 %v151
    %v209 = vunpack.c.h.b16 %v151
    %v210 = vunpack.c.l.b16 %v152
    %v211 = vunpack.c.h.b16 %v152
    %v212 = vunpack.c.l.b16 %v153
    %v213 = vunpack.c.h.b16 %v153
    %v214 = vpack.c.b16 %v184, %v182
    %v215 = vpack.c.b16 %v185, %v183
    %v216 = vpack.c.b16 %v188, %v186
    %v217 = vpack.c.b16 %v189, %v187
    %v218 = vpack.c.b16 %v192, %v190
    %v219 = vpack.c.b16 %v193, %v191
    %v220 = vpack.c.b16 %v196, %v194
    %v221 = vpack.c.b16 %v197, %v195
    %v222 = vpack.c.b16 %v200, %v198
    %v223 = vpack.c.b16 %v201, %v199
    %v224 = vpack.c.b16 %v204, %v202
    %v225 = vpack.c.b16 %v205, %v203
    %v226 = vpack.c.b16 %v208, %v206
    %v227 = vpack.c.b16 %v209, %v207
    %v228 = vpack.c.b16 %v212, %v210
    %v229 = vpack.c.b16 %v213, %v211
    %246 = vmatprep.subr.bf16.mxu0 %v229
    %247 = vmatpush1.bf16.msra.mxu0 %v228
    %248 = vmatprep.subr.bf16.mxu0 %v227
    %249 = vmatpush1.bf16.msra.mxu0 %v226
    %250 = vmatprep.subr.bf16.mxu0 %v225
    %251 = vmatpush1.bf16.msra.mxu0 %v224
    %252 = vmatprep.subr.bf16.mxu0 %v223
    %253 = vmatpush1.bf16.msra.mxu0 %v222
    %254 = vmatprep.subr.bf16.mxu0 %v221
    %255 = vmatpush1.bf16.msra.mxu0 %v220
    %256 = vmatprep.subr.bf16.mxu0 %v219
    %257 = vmatpush1.bf16.msra.mxu0 %v218
    %258 = vmatprep.subr.bf16.mxu0 %v217
    %259 = vmatpush1.bf16.msra.mxu0 %v216
    %260 = vmatprep.subr.bf16.mxu0 %v215
    %261 = vmatpush1.bf16.msra.mxu0 %v214
    %262 = vmatprep.subr.bf16.mxu0 0
    %263 = vmatpush2.bf16.msra.mxu0 0
    %264 = vmatprep.subr.bf16.mxu0 0
    %265 = vmatpush2.bf16.msra.mxu0 0
    %266 = vmatprep.subr.bf16.mxu0 0
    %267 = vmatpush2.bf16.msra.mxu0 0
    %268 = vmatprep.subr.bf16.mxu0 0
    %269 = vmatpush2.bf16.msra.mxu0 0
    %270 = vmatprep.subr.bf16.mxu0 0
    %271 = vmatpush2.bf16.msra.mxu0 0
    %272 = vmatprep.subr.bf16.mxu0 0
    %273 = vmatpush2.bf16.msra.mxu0 0
    %274 = vmatprep.subr.bf16.mxu0 0
    %275 = vmatpush2.bf16.msra.mxu0 0
    %276 = vmatprep.subr.bf16.mxu0 0
    %277 = vmatpush2.bf16.msra.mxu0 0
    %278 = vmatprep.mubr.bf16.mxu0 0
    %279 = vmatmul.mubr.bf16.gmra.mxu0 %v137
    %v280 = vpop.f32.mrf.mxu0
    %v281 = vadd.f32 %v159, %v280
    %v282 = vpop.f32.mrf.mxu0
    %v283 = vadd.f32 %v163, %v282
    %v284 = vpop.f32.mrf.mxu0
    %v285 = vpop.f32.mrf.mxu0
    %286 = vdwg.mxu0
    %v287 = vmax.f32 %v281, 0.0
    %v288 = vmax.f32 %v283, 0.0
    %v289 = vld [vmem:[%s5] sm:$0x3]
    %v290 = vunpack.c.l.bf16 %v289
    %v292 = vlaneseq
    %v293 = vshrl.u32 %v292, 7
    %v294 = vsub.s32 0, %v293
    %v295 = vrot.slane %v290, %v294
    %v296 = vlaneseq
    %v297 = vshrl.u32 %v296, 7
    %v298 = vsub.s32 2, %v297
    %v299 = vrot.slane %v290, %v298
    %v302 = vlaneseq
    %v303 = vshrl.u32 %v302, 7
    %v304 = vsub.s32 0, %v303
    %v305 = vrot.slane %v295, %v304
    %v306 = vlaneseq
    %v307 = vshrl.u32 %v306, 7
    %v308 = vsub.s32 0, %v307
    %v309 = vrot.slane %v299, %v308
    %v310 = vmul.f32 %v287, %v305
    %v311 = vmul.f32 %v288, %v309
    %v312 = vadd.f32 %v310, %v311
    %313 = vadd.xlane.f32.xlu0 %v312
    %v314 = vpop.xlane.xlu0 %313
    %v315 = vld [vmem:[#allocation2] sm:$0x1]
    %v317 = vlaneseq
    %v318 = vshrl.u32 %v317, 7
    %v319 = vsub.s32 0, %v318
    %v320 = vrot.slane %v315, %v319
    %v322 = vadd.f32 %v314, %v320
    %v323 = vxor.u32 %v322, 2147483648
    %v324 = vmul.f32 %v323, 1.442695
    %v325 = vpow.pop %v324
    %v326 = vadd.f32 %v325, 1.0
    %v327 = vrcp.pop %v326
    %v328 = vmul.f32 1.0, %v327
    %vm329 = vcmask 7168
    %330 = vst.msk [vmem:[%s7] sm:$0xff] %vm329, %v328
    // Predicated region
    $region42: #{tpu_custom_call.1} parent=1 // pred_check
      _
    $region43: #{tpu_custom_call.1} parent=1 // pred_check_branch
      %332 = sbr.rel (0) target = $region45
    $region44: #{tpu_custom_call.1} parent=1 // pred_region
      _
    $region45: #{tpu_custom_call.1} parent=1 // pred_fallthru
      _
    // Predicated region
    $region46: #{tpu_custom_call.1} parent=1 // pred_check
      _
    $region47: #{tpu_custom_call.1} parent=1 // pred_check_branch
      %334 = sbr.rel (0) target = $region49
    $region48: #{tpu_custom_call.1} parent=1 // pred_region
      _
    $region49: #{tpu_custom_call.1} parent=1 // pred_fallthru
      _
    %335 = vsyncpa [#allocation4], 1
    %336 = vsyncpa [#allocation6], 1

</llo_original>
